<compile_context>
chip_gen: v7x
topology: tpu7x:2x2x1
jax: 0.10.0
libtpu: 0.0.40
codegen_flags: <defaults>
</compile_context>

<pallas_src>
import functools

import jax
import jax.numpy as jnp
from jax import lax
from jax.experimental import pallas as pl
from jax.experimental.pallas import tpu as pltpu

_NEG_BIG = -1e30  # large-negative mask instead of -inf (no inf arithmetic)


def _round_up(x, m):
    return ((x + m - 1) // m) * m


# --------------------------------------------------------------------------
# Kernel 1: row normalization  y = 3 * x / max(||x||_2, 1e-12),  sq = ||y||^2
# --------------------------------------------------------------------------
def _normalize3_kernel(x_ref, y_ref, sq_ref):
    x = x_ref[...].astype(jnp.float32)
    ss = jnp.sum(x * x, axis=1, keepdims=True)
    # 1 / max(sqrt(ss), 1e-12) == rsqrt(max(ss, 1e-24)); rsqrt runs on the EUP.
    inv = lax.rsqrt(jnp.maximum(ss, 1e-24))
    y = 3.0 * x * inv
    y_ref[...] = y.astype(y_ref.dtype)
    sq_ref[...] = jnp.sum(y * y, axis=1, keepdims=True)


def _normalize3(x, row_tile):
    n, d = x.shape
    return pl.pallas_call(
        _normalize3_kernel,
        out_shape=(
            jax.ShapeDtypeStruct((n, d), x.dtype),
            jax.ShapeDtypeStruct((n, 1), jnp.float32),
        ),
        grid=(n // row_tile,),
        in_specs=[pl.BlockSpec((row_tile, d), lambda i: (i, 0))],
        out_specs=(
            pl.BlockSpec((row_tile, d), lambda i: (i, 0)),
            pl.BlockSpec((row_tile, 1), lambda i: (i, 0)),
        ),
        compiler_params=pltpu.CompilerParams(
            dimension_semantics=("parallel",)),
    )(x)


# --------------------------------------------------------------------------
# Kernel 2: tiled ProxyNCA loss with MXU distances + online logsumexp
# --------------------------------------------------------------------------
def _proxynca_loss_kernel(lab_ref, bn_ref, bsq_ref, pn_ref, psq_ref, out_ref,
                          m_sc, s_sc, pos_sc, *, bs, num_classes):
    i = pl.program_id(0)            # batch-tile index
    k = pl.program_id(1)            # proxy-tile index (reduction, innermost)
    nb = pl.num_programs(0)
    nc = pl.num_programs(1)
    tb = m_sc.shape[0]
    tc = psq_ref.shape[1]

    @pl.when(jnp.logical_and(i == 0, k == 0))
    def _():
        out_ref[...] = jnp.zeros_like(out_ref)

    @pl.when(k == 0)
    def _():
        m_sc[...] = jnp.full_like(m_sc, _NEG_BIG)
        s_sc[...] = jnp.zeros_like(s_sc)
        pos_sc[...] = jnp.zeros_like(pos_sc)

    bn = bn_ref[...]                 # (tb, D)  input dtype (f32 or bf16)
    pn = pn_ref[...]                 # (tc, D)
    bsq = bsq_ref[...]               # (tb, 1)  f32
    psq = psq_ref[...]               # (1, tc)  f32
    lab = lab_ref[...]               # (tb, 1)  int32 (padded rows = -1)

    # dist[r, c] = ||bn_r||^2 + ||pn_c||^2 - 2 <bn_r, pn_c>   (MXU matmul)
    dots = lax.dot_general(bn, pn, (((1,), (1,)), ((), ())),
                           preferred_element_type=jnp.float32)
    dist = bsq + psq - 2.0 * dots    # (tb, tc) f32

    # Global proxy-column indices for this tile.
    col = lax.broadcasted_iota(jnp.int32, (tb, tc), 1) + k * tc
    is_pos = col == lab                                    # one-hot positive
    invalid = jnp.logical_or(is_pos, col >= num_classes)   # positive / padding

    # Distance to the single positive proxy, accumulated across proxy tiles.
    pos_sc[...] += jnp.sum(jnp.where(is_pos, dist, 0.0), axis=1, keepdims=True)

    # Online logsumexp over the negative proxies.
    neg = jnp.where(invalid, _NEG_BIG, -dist)
    m_prev = m_sc[...]
    m_new = jnp.maximum(m_prev, jnp.max(neg, axis=1, keepdims=True))
    p = jnp.exp(neg - m_new)
    s_sc[...] = jnp.exp(m_prev - m_new) * s_sc[...] + jnp.sum(
        p, axis=1, keepdims=True)
    m_sc[...] = m_new

    # Finalize this batch tile: per-row loss, mask padded rows, accumulate.
    @pl.when(k == nc - 1)
    def _():
        row = lax.broadcasted_iota(jnp.int32, (tb, 1), 0) + i * tb
        valid = (row < bs).astype(jnp.float32)
        per_row = pos_sc[...] + m_sc[...] + jnp.log(s_sc[...])
        out_ref[...] += jnp.sum(per_row * valid, axis=(0, 1), keepdims=True)

    @pl.when(jnp.logical_and(i == nb - 1, k == nc - 1))
    def _():
        out_ref[...] = out_ref[...] / float(bs)


def proxynca_loss(batch, proxies, labels):
    """batch: (BS, D), proxies: (C, D), labels: (BS,) int -> scalar f32 loss."""
    BS, D = batch.shape
    C, D2 = proxies.shape
    assert D == D2

    # ---- tile sizes --------------------------------------------------------
    tb = _round_up(min(BS, 128), 8)          # batch rows per tile
    Cp = _round_up(C, 128)                   # pad proxy count to lane multiple
    tc = 512
    while tc > 128 and Cp % tc != 0:
        tc //= 2
    # Shrink the proxy tile so double-buffered input tiles + the (tb, tc)
    # logit block stay well under the default scoped-VMEM window of every
    # generation (v5e 16 MiB, v6e/v7x 32 MiB; v7x physical VMEM is 64 MiB).
    itemsize = jnp.dtype(batch.dtype).itemsize
    budget = 12 * 2 ** 20
    while tc > 128 and (2 * itemsize * (tb + tc) * D + 4 * tb * tc) > budget:
        tc //= 2
    BSp = _round_up(BS, tb)
    # TODO(synk): also tile the feature axis D for very large embedding dims.

    # ---- pad inputs (padded rows / proxy columns are masked in-kernel) -----
    batch_p = jnp.pad(batch, ((0, BSp - BS), (0, 0)))
    proxies_p = jnp.pad(proxies, ((0, Cp - C), (0, 0)))
    labels_p = jnp.pad(labels.reshape(BS, 1).astype(jnp.int32),
                       ((0, BSp - BS), (0, 0)), constant_values=-1)

    # ---- hoisted row normalization (one pass per operand) ------------------
    bn, bsq = _normalize3(batch_p, tb)
    pn, psq = _normalize3(proxies_p, tc)
    psq_row = psq.reshape(1, Cp)             # lane-dense row vector of ||pn||^2

    grid = (BSp // tb, Cp // tc)             # reduction (proxy) axis innermost
    kernel = functools.partial(_proxynca_loss_kernel, bs=BS, num_classes=C)

    out = pl.pallas_call(
        kernel,
        out_shape=jax.ShapeDtypeStruct((1, 1), jnp.float32),
        grid=grid,
        in_specs=[
            pl.BlockSpec((tb, 1), lambda i, k: (i, 0)),    # labels
            pl.BlockSpec((tb, D), lambda i, k: (i, 0)),    # normalized batch
            pl.BlockSpec((tb, 1), lambda i, k: (i, 0)),    # ||bn||^2
            pl.BlockSpec((tc, D), lambda i, k: (k, 0)),    # normalized proxies
            pl.BlockSpec((1, tc), lambda i, k: (0, k)),    # ||pn||^2
        ],
        out_specs=pl.BlockSpec((1, 1), lambda i, k: (0, 0)),
        scratch_shapes=[
            pltpu.VMEM((tb, 1), jnp.float32),   # running max   (online lse)
            pltpu.VMEM((tb, 1), jnp.float32),   # running sum   (online lse)
            pltpu.VMEM((tb, 1), jnp.float32),   # positive-proxy distance
        ],
        compiler_params=pltpu.CompilerParams(
            dimension_semantics=("arbitrary", "arbitrary"),
            vmem_limit_bytes=48 * 1024 * 1024),
    )(labels_p, bn, bsq, pn, psq_row)
    return out[0, 0]


def _reference_loss(batch, proxies, labels):
    # Pure-JAX reference mirroring the PyTorch forward.
    bn = 3.0 * batch / jnp.maximum(
        jnp.linalg.norm(batch, axis=1, keepdims=True), 1e-12)
    pn = 3.0 * proxies / jnp.maximum(
        jnp.linalg.norm(proxies, axis=1, keepdims=True), 1e-12)
    dist = jnp.sum((bn[:, None, :] - pn[None, :, :]) ** 2, axis=-1)   # (BS, C)
    BS, C = dist.shape
    one_hot = jax.nn.one_hot(labels, C, dtype=bool)
    pos = jnp.sum(jnp.where(one_hot, dist, 0.0), axis=1)
    neg_logits = jnp.where(one_hot, -jnp.inf, -dist)
    lse = jax.scipy.special.logsumexp(neg_logits, axis=1)
    return jnp.mean(pos + lse)


if __name__ == "__main__":
    num_proxies = 8       # number of classes / proxies
    embedding_dim = 32
    batch_size = 8

    key = jax.random.PRNGKey(0)
    k_proxy, k_batch, k_lab = jax.random.split(key, 3)

    # Deterministic "parameter" init, matching torch.randn(num_proxies, D) / 8.
    proxies = jax.random.normal(k_proxy, (num_proxies, embedding_dim),
                                dtype=jnp.float32) / 8.0
    batch = jax.random.normal(k_batch, (batch_size, embedding_dim),
                              dtype=jnp.float32)
    labels = jax.random.randint(k_lab, (batch_size,), 0, num_proxies,
                                dtype=jnp.int32)

    loss = proxynca_loss(batch, proxies, labels)
    jax.block_until_ready(loss)

    ref = _reference_loss(batch, proxies, labels)
    assert jnp.allclose(loss, ref, atol=1e-4, rtol=1e-4), (loss, ref)

    print("KERNEL_OK")
</pallas_src>

<mosaic_0001>
module attributes {stable_mosaic.version = 11 : i64} {
  func.func @_normalize3_kernel(%arg0: i32, %arg1: memref<8x32xf32, #tpu.memory_space<vmem>>, %arg2: memref<8x32xf32, #tpu.memory_space<vmem>>, %arg3: memref<8x1xf32, #tpu.memory_space<vmem>>) attributes {dimension_semantics = [#tpu.dimension_semantics<parallel>], iteration_bounds = array<i64: 1>, scalar_prefetch = 0 : i64, scratch_operands = 0 : i64, tpu.core_type = #tpu.core_type<tc>, window_params = [{transform_indices = @transform_0, window_bounds = array<i64: 8, 32>}, {transform_indices = @transform_1, window_bounds = array<i64: 8, 32>}, {transform_indices = @transform_2, window_bounds = array<i64: 8, 1>}]} {
    %c0 = arith.constant 0 : index
    %c0_0 = arith.constant 0 : index
    %0 = vector.load %arg1[%c0, %c0_0] : memref<8x32xf32, #tpu.memory_space<vmem>>, vector<8x32xf32>
    %1 = arith.mulf %0, %0 : vector<8x32xf32>
    %cst = arith.constant dense<0.000000e+00> : vector<8xf32>
    %2 = vector.multi_reduction <add>, %1, %cst [1] : vector<8x32xf32> to vector<8xf32>
    %3 = vector.shape_cast %2 : vector<8xf32> to vector<8x1xf32>
    %cst_1 = arith.constant 1.000000e-24 : f32
    %4 = vector.broadcast %cst_1 : f32 to vector<8x1xf32>
    %5 = arith.maximumf %3, %4 : vector<8x1xf32>
    %6 = math.rsqrt %5 : vector<8x1xf32>
    %cst_2 = arith.constant 3.000000e+00 : f32
    %7 = vector.broadcast %cst_2 : f32 to vector<8x32xf32>
    %8 = arith.mulf %7, %0 : vector<8x32xf32>
    %9 = vector.broadcast %6 : vector<8x1xf32> to vector<8x32xf32>
    %10 = arith.mulf %8, %9 : vector<8x32xf32>
    %c0_3 = arith.constant 0 : index
    %c0_4 = arith.constant 0 : index
    %11 = vector.load %arg2[%c0_3, %c0_4] : memref<8x32xf32, #tpu.memory_space<vmem>>, vector<8x32xf32>
    tpu.vector_store %arg2[%c0_3, %c0_4], %10 {strides = array<i32>} : memref<8x32xf32, #tpu.memory_space<vmem>>, vector<8x32xf32>,
    %12 = arith.mulf %10, %10 : vector<8x32xf32>
    %cst_5 = arith.constant dense<0.000000e+00> : vector<8xf32>
    %13 = vector.multi_reduction <add>, %12, %cst_5 [1] : vector<8x32xf32> to vector<8xf32>
    %14 = vector.shape_cast %13 : vector<8xf32> to vector<8x1xf32>
    %c0_6 = arith.constant 0 : index
    %c0_7 = arith.constant 0 : index
    %15 = vector.load %arg3[%c0_6, %c0_7] : memref<8x1xf32, #tpu.memory_space<vmem>>, vector<8x1xf32>
    tpu.vector_store %arg3[%c0_6, %c0_7], %14 {strides = array<i32>} : memref<8x1xf32, #tpu.memory_space<vmem>>, vector<8x1xf32>,
    return
  }
  func.func @transform_0(%arg0: i32) -> (i32, i32) {
    %c0_i32 = arith.constant 0 : i32
    %c0_i32_0 = arith.constant 0 : i32
    return %arg0, %c0_i32 : i32, i32
  }
  func.func @transform_1(%arg0: i32) -> (i32, i32) {
    %c0_i32 = arith.constant 0 : i32
    %c0_i32_0 = arith.constant 0 : i32
    return %arg0, %c0_i32 : i32, i32
  }
  func.func @transform_2(%arg0: i32) -> (i32, i32) {
    %c0_i32 = arith.constant 0 : i32
    %c0_i32_0 = arith.constant 0 : i32
    return %arg0, %c0_i32 : i32, i32
  }
}

</mosaic_0001>

<llo_original>
// kernel: tpu_custom_call.1
$region0: #{tpu_custom_call.1}
  #allocation0 [shape = 'u32[]', space=smem, size = 0x4, offset = 0x4, fixed_abs, tag = 'smem constant byte address 0x4 - core index']
  #allocation1 [shape = 'u32[144,128]{1,0:T(1,128)}', space=vmem, size = 0x12000, scoped, tag = 'internal scratch']
  %s0 = inlined_call_operand.hbm [shape: f32[8,32], index: 0, kind: input, shape index: {}]
  %s1 = inlined_call_operand.hbm [shape: f32[8,32], index: 1, kind: output, shape index: {0}]
  %s2 = inlined_call_operand.vmem [shape: f32[8,1], index: 2, kind: output, shape index: {1}]
  %3 = xla_tuple %s1, %s2
  %s4 = sld [smem:[#allocation0]]
  $region26: #{tpu_custom_call.1} parent=0
    _
  %s6 = ssub.s32 1, %s4
  %s7 = scalar_select 0, %s6, %s4
  $region1: #{tpu_custom_call.1} parent=0
    #allocation2 [shape = 'u8[4096]{0}', space=vmem, size = 0x1000, scoped, tag = 'input window, operand 0, single buffered']
    #allocation3 [shape = 's32[1]{0}', space=sflag, size = 0x4, scoped, tag = 'scoped memory for tpu_custom_call.1']
    #allocation4 [shape = 's32[1]{0}', space=sflag, size = 0x4, scoped, tag = 'scoped memory for tpu_custom_call.1']
    #allocation5 [shape = 'u8[4096]{0}', space=vmem, size = 0x1000, scoped, tag = 'output window, operand 0, single buffered']
    %8 = vsyncpa [#allocation3], 0
    %9 = vsyncpa [#allocation4], 0
    // Predicated region
    $region2: #{tpu_custom_call.1} parent=1 // pred_check
      _
    $region3: #{tpu_custom_call.1} parent=1 // pred_check_branch
      %11 = sbr.rel (0) target = $region5
    $region4: #{tpu_custom_call.1} parent=1 // pred_region
      %s13 = ssub.s32 128, 128
      %14 = vsyncadd [#allocation3], %s13
      %s16 = sshll.u32 [#allocation2], 4
      %s17 = int_to_ptr.vmem [resolvable:$true] %s16
      %19 = dma.hbm_to_vmem [thread:$0]  %s0, 128, %s17, [#allocation3]
    $region5: #{tpu_custom_call.1} parent=1 // pred_fallthru
      _
    // Predicated region
    $region6: #{tpu_custom_call.1} parent=1 // pred_check
      _
    $region7: #{tpu_custom_call.1} parent=1 // pred_check_branch
      %21 = sbr.rel (0) target = $region9
    $region8: #{tpu_custom_call.1} parent=1 // pred_region
      %22 = dma.done [#allocation3], 128
    $region9: #{tpu_custom_call.1} parent=1 // pred_fallthru
      _
    %v23 = vld [vmem:[#allocation2] sm:$0xff]
    %v24 = vmul.f32 %v23, %v23
    %vm25 = vcmask 261120
    %v26 = vsel %vm25, %v24, 0.0
    %27 = vadd.xlane.f32.xlu0 %v26
    %v28 = vpop.xlane.xlu0 %27
    %v29 = vmax.f32 %v28, 1e-24
    %v30 = vrsqrt.pop %v29
    %v31 = vmul.f32 %v23, 3.0
    %v32 = vmul.f32 %v31, %v30
    %33 = vst.msk [vmem:[#allocation5] sm:$0xff] %vm25, %v32
    %v34 = vmul.f32 %v32, %v32
    %v35 = vsel %vm25, %v34, 0.0
    %36 = vadd.xlane.f32.xlu0 %v35
    %v37 = vpop.xlane.xlu0 %36
    %vm38 = vcmask 7168
    %39 = vst.msk [vmem:[%s2] sm:$0xff] %vm38, %v37
    // Predicated region
    $region10: #{tpu_custom_call.1} parent=1 // pred_check
      _
    $region11: #{tpu_custom_call.1} parent=1 // pred_check_branch
      %41 = sbr.rel (0) target = $region13
    $region12: #{tpu_custom_call.1} parent=1 // pred_region
      %s43 = ssub.s32 128, 128
      %44 = vsyncadd [#allocation4], %s43
      %s46 = sshll.u32 [#allocation5], 4
      %s47 = int_to_ptr.vmem [resolvable:$true] %s46
      %49 = dma.vmem_to_hbm [thread:$0]  %s47, 128, %s1, [#allocation4]
    $region13: #{tpu_custom_call.1} parent=1 // pred_fallthru
      _
    // Predicated region
    $region14: #{tpu_custom_call.1} parent=1 // pred_check
      _
    $region15: #{tpu_custom_call.1} parent=1 // pred_check_branch
      %51 = sbr.rel (0) target = $region17
    $region16: #{tpu_custom_call.1} parent=1 // pred_region
      _
    $region17: #{tpu_custom_call.1} parent=1 // pred_fallthru
      _
    // Predicated region
    $region18: #{tpu_custom_call.1} parent=1 // pred_check
      _
    $region19: #{tpu_custom_call.1} parent=1 // pred_check_branch
      %53 = sbr.rel (0) target = $region21
    $region20: #{tpu_custom_call.1} parent=1 // pred_region
      %54 = dma.done [#allocation4], 128
    $region21: #{tpu_custom_call.1} parent=1 // pred_fallthru
      _
    // Predicated region
    $region22: #{tpu_custom_call.1} parent=1 // pred_check
      _
    $region23: #{tpu_custom_call.1} parent=1 // pred_check_branch
      %56 = sbr.rel (0) target = $region25
    $region24: #{tpu_custom_call.1} parent=1 // pred_region
      _
    $region25: #{tpu_custom_call.1} parent=1 // pred_fallthru
      _
    %57 = vsyncpa [#allocation3], 1
    %58 = vsyncpa [#allocation4], 1

</llo_original>
